<compile_context>
chip_gen: v6e
topology: v6e:2x2x1
jax: 0.10.0
libtpu: 0.0.40
codegen_flags: <defaults>
</compile_context>

<pallas_src>
import math

import jax
import jax.numpy as jnp
from jax.experimental import pallas as pl
from jax.experimental.pallas import tpu as pltpu


def _pair(v):
    if isinstance(v, (tuple, list)):
        return (int(v[0]), int(v[1]))
    return (int(v), int(v))


def _round_up(v, m):
    return (v + m - 1) // m * m


def _make_pad_kernel(p2_lo, p2_hi, p3_lo, p3_hi, H, W, dtype):
    """Kernel on a flat (B, H*W) input tile -> flat (B, H_out*W_out) tile.

    The padded image, viewed flat, is:
      [p2_lo*W_out + p3_lo zeros] row0 [gap zeros] row1 ... rowH-1
      [p3_hi + p2_hi*W_out zeros]
    with gap = p3_hi + p3_lo between consecutive rows.  We assemble it in
    registers with lane concatenation and issue ONE dense full-tile store.
    """
    W_out = W + p3_lo + p3_hi
    lead = p2_lo * W_out + p3_lo
    trail = p3_hi + p2_hi * W_out
    gap = p3_lo + p3_hi

    def kernel(x_ref, o_ref):
        b = o_ref.shape[0]

        parts = []
        if lead:
            parts.append(jnp.zeros((b, lead), dtype))
        if gap == 0:
            # No W padding: interior rows are already contiguous in the flat
            # layout, so the whole input block is the interior.
            parts.append(x_ref[...])
        else:
            # TODO(synk): for very large H this static unroll produces a big
            # concat tree; acceptable for typical image sizes.
            for h in range(H):
                parts.append(x_ref[:, pl.ds(h * W, W)])
                if h + 1 < H:
                    parts.append(jnp.zeros((b, gap), dtype))
        if trail:
            parts.append(jnp.zeros((b, trail), dtype))

        tile = parts[0] if len(parts) == 1 else jnp.concatenate(parts, axis=1)
        o_ref[...] = tile  # single lane-dense full-tile store

    return kernel


def same_pad_2d(x, kernel_size, stride):
    """Pallas implementation of SamePad2d.forward (exact PyTorch semantics)."""
    ks = _pair(kernel_size)
    st = _pair(stride)

    N, C, d2, d3 = x.shape

    # --- exact reproduction of the module's (crosswise) pad computation ---
    in_width = d2            # module: input.size()[2]
    in_height = d3           # module: input.size()[3]
    out_width = math.ceil(float(in_width) / float(st[0]))
    out_height = math.ceil(float(in_height) / float(st[1]))
    pad_along_width = (out_width - 1) * st[0] + ks[0] - in_width
    pad_along_height = (out_height - 1) * st[1] + ks[1] - in_height
    pad_left = int(math.floor(pad_along_width / 2))
    pad_top = int(math.floor(pad_along_height / 2))
    pad_right = int(pad_along_width - pad_left)
    pad_bottom = int(pad_along_height - pad_top)

    # F.pad(x, (pad_left, pad_right, pad_top, pad_bottom)):
    #   last dim (dim 3) gets (pad_left, pad_right); dim 2 gets (pad_top, pad_bottom)
    p2_lo, p2_hi = pad_top, pad_bottom
    p3_lo, p3_hi = pad_left, pad_right

    # TODO(synk): negative pads (stride > kernel_size) mean cropping in F.pad;
    # not handled here.
    assert p2_lo >= 0 and p2_hi >= 0 and p3_lo >= 0 and p3_hi >= 0, (
        "negative SAME padding (stride > kernel_size) not supported")

    if p2_lo == 0 and p2_hi == 0 and p3_lo == 0 and p3_hi == 0:
        return x  # identity pad

    H_out = d2 + p2_lo + p2_hi
    W_out = d3 + p3_lo + p3_hi
    L_in = d2 * d3
    L_out = H_out * W_out
    NC = N * C

    dtype = jnp.dtype(x.dtype)
    itemsize = dtype.itemsize
    # sublane tiling multiple by dtype width: f32 -> 8, bf16 -> 16, int8/fp8 -> 32
    sublane = max(8, 32 // max(itemsize, 1))
    LANE = 128

    # --- layout-aware VMEM budget (bytes per N*C slice) ---
    # Flat 2-D blocks have no sublane-direction blowup; only the last dim pads
    # to a multiple of 128 lanes.  Count double-buffered in+out tiles plus one
    # extra output tile of headroom for the in-register concatenated temporary.
    in_elems = _round_up(L_in, LANE)
    out_elems = _round_up(L_out, LANE)
    per_slice_bytes = (2 * (in_elems + out_elems) + out_elems) * itemsize

    try:
        phys_vmem = int(pltpu.get_tpu_info().vmem_capacity_bytes)
    except Exception:
        phys_vmem = 64 * 1024 * 1024       # v7x per-TC worst case
    vmem_limit = min(phys_vmem * 3 // 4, 96 * 1024 * 1024)
    tile_budget = vmem_limit * 3 // 4      # keep headroom inside the limit

    max_block = max(1, tile_budget // per_slice_bytes)

    # Grid-step minimum: aim for >=4 steps when NC allows (>=2 per TensorCore
    # on v7x after the megacore split; cheap overhead elsewhere).
    min_steps = min(4, max(1, NC // sublane))
    block_cap = pl.cdiv(NC, min_steps)

    block_nc = min(NC, int(max_block), int(block_cap))
    if block_nc < NC:
        # second-to-last block dim must be a sublane multiple (or the full dim)
        block_nc = max(sublane, (block_nc // sublane) * sublane)
        block_nc = min(block_nc, NC)
    block_nc = max(1, block_nc)

    grid = (pl.cdiv(NC, block_nc),)

    # Free reshapes (contiguous leading dims): present lane-dense 2-D arrays.
    x2 = x.reshape(NC, L_in)

    kernel = _make_pad_kernel(p2_lo, p2_hi, p3_lo, p3_hi, d2, d3, dtype)

    out2 = pl.pallas_call(
        kernel,
        out_shape=jax.ShapeDtypeStruct((NC, L_out), x.dtype),
        grid=grid,
        # last dims equal the full array dims -> OK w.r.t. the (8,128) rule
        in_specs=[pl.BlockSpec((block_nc, L_in), lambda i: (i, 0))],
        out_specs=pl.BlockSpec((block_nc, L_out), lambda i: (i, 0)),
        compiler_params=pltpu.CompilerParams(
            dimension_semantics=("parallel",),
            vmem_limit_bytes=int(vmem_limit)),
        cost_estimate=pl.CostEstimate(
            flops=0,
            transcendentals=0,
            bytes_accessed=int(NC * (L_in + L_out) * itemsize)),
    )(x2)

    return out2.reshape(N, C, H_out, W_out)


def _ref_same_pad(x, ks, st):
    """Pure-jnp reference with the module's exact crosswise semantics."""
    d2, d3 = x.shape[2], x.shape[3]
    ow = math.ceil(float(d2) / float(st[0]))
    oh = math.ceil(float(d3) / float(st[1]))
    paw = (ow - 1) * st[0] + ks[0] - d2
    pah = (oh - 1) * st[1] + ks[1] - d3
    p_l, p_t = paw // 2, pah // 2
    p_r, p_b = paw - p_l, pah - p_t
    return jnp.pad(x, ((0, 0), (0, 0), (p_t, p_b), (p_l, p_r)))


if __name__ == "__main__":
    # SamePad2d has no parameters; just construct a deterministic input.
    key = jax.random.PRNGKey(0)
    x = jax.random.normal(key, (2, 4, 16, 16), dtype=jnp.float32)

    # Case 1: square kernel/stride (right/bottom pads only).
    y = same_pad_2d(x, 3, 2)
    y = jax.block_until_ready(y)
    ref = _ref_same_pad(x, (3, 3), (2, 2))
    assert y.shape == ref.shape, (y.shape, ref.shape)
    assert bool(jnp.array_equal(y, ref))

    # Case 2: asymmetric kernel/stride (exercises left pads + crosswise mapping).
    y2 = same_pad_2d(x, (5, 3), (1, 2))
    y2 = jax.block_until_ready(y2)
    ref2 = _ref_same_pad(x, (5, 3), (1, 2))
    assert y2.shape == ref2.shape, (y2.shape, ref2.shape)
    assert bool(jnp.array_equal(y2, ref2))

    print("KERNEL_OK")
</pallas_src>

<mosaic_0001>
module attributes {stable_mosaic.version = 11 : i64} {
  func.func @kernel(%arg0: i32, %arg1: memref<8x256xf32, #tpu.memory_space<vmem>>, %arg2: memref<8x289xf32, #tpu.memory_space<vmem>>) attributes {dimension_semantics = [#tpu.dimension_semantics<parallel>], iteration_bounds = array<i64: 1>, scalar_prefetch = 0 : i64, scratch_operands = 0 : i64, tpu.core_type = #tpu.core_type<tc>, window_params = [{transform_indices = @transform_0, window_bounds = array<i64: 8, 256>}, {transform_indices = @transform_1, window_bounds = array<i64: 8, 289>}]} {
    %c0 = arith.constant 0 : index
    %c0_0 = arith.constant 0 : index
    %0 = vector.load %arg1[%c0, %c0_0] : memref<8x256xf32, #tpu.memory_space<vmem>>, vector<8x16xf32>
    %cst = arith.constant 0.000000e+00 : f32
    %1 = vector.broadcast %cst : f32 to vector<8x1xf32>
    %c0_1 = arith.constant 0 : index
    %c16 = arith.constant 16 : index
    %2 = vector.load %arg1[%c0_1, %c16] : memref<8x256xf32, #tpu.memory_space<vmem>>, vector<8x16xf32>
    %cst_2 = arith.constant 0.000000e+00 : f32
    %3 = vector.broadcast %cst_2 : f32 to vector<8x1xf32>
    %c0_3 = arith.constant 0 : index
    %c32 = arith.constant 32 : index
    %4 = vector.load %arg1[%c0_3, %c32] : memref<8x256xf32, #tpu.memory_space<vmem>>, vector<8x16xf32>
    %cst_4 = arith.constant 0.000000e+00 : f32
    %5 = vector.broadcast %cst_4 : f32 to vector<8x1xf32>
    %c0_5 = arith.constant 0 : index
    %c48 = arith.constant 48 : index
    %6 = vector.load %arg1[%c0_5, %c48] : memref<8x256xf32, #tpu.memory_space<vmem>>, vector<8x16xf32>
    %cst_6 = arith.constant 0.000000e+00 : f32
    %7 = vector.broadcast %cst_6 : f32 to vector<8x1xf32>
    %c0_7 = arith.constant 0 : index
    %c64 = arith.constant 64 : index
    %8 = vector.load %arg1[%c0_7, %c64] : memref<8x256xf32, #tpu.memory_space<vmem>>, vector<8x16xf32>
    %cst_8 = arith.constant 0.000000e+00 : f32
    %9 = vector.broadcast %cst_8 : f32 to vector<8x1xf32>
    %c0_9 = arith.constant 0 : index
    %c80 = arith.constant 80 : index
    %10 = vector.load %arg1[%c0_9, %c80] : memref<8x256xf32, #tpu.memory_space<vmem>>, vector<8x16xf32>
    %cst_10 = arith.constant 0.000000e+00 : f32
    %11 = vector.broadcast %cst_10 : f32 to vector<8x1xf32>
    %c0_11 = arith.constant 0 : index
    %c96 = arith.constant 96 : index
    %12 = vector.load %arg1[%c0_11, %c96] : memref<8x256xf32, #tpu.memory_space<vmem>>, vector<8x16xf32>
    %cst_12 = arith.constant 0.000000e+00 : f32
    %13 = vector.broadcast %cst_12 : f32 to vector<8x1xf32>
    %c0_13 = arith.constant 0 : index
    %c112 = arith.constant 112 : index
    %14 = vector.load %arg1[%c0_13, %c112] : memref<8x256xf32, #tpu.memory_space<vmem>>, vector<8x16xf32>
    %cst_14 = arith.constant 0.000000e+00 : f32
    %15 = vector.broadcast %cst_14 : f32 to vector<8x1xf32>
    %c0_15 = arith.constant 0 : index
    %c128 = arith.constant 128 : index
    %16 = vector.load %arg1[%c0_15, %c128] : memref<8x256xf32, #tpu.memory_space<vmem>>, vector<8x16xf32>
    %cst_16 = arith.constant 0.000000e+00 : f32
    %17 = vector.broadcast %cst_16 : f32 to vector<8x1xf32>
    %c0_17 = arith.constant 0 : index
    %c144 = arith.constant 144 : index
    %18 = vector.load %arg1[%c0_17, %c144] : memref<8x256xf32, #tpu.memory_space<vmem>>, vector<8x16xf32>
    %cst_18 = arith.constant 0.000000e+00 : f32
    %19 = vector.broadcast %cst_18 : f32 to vector<8x1xf32>
    %c0_19 = arith.constant 0 : index
    %c160 = arith.constant 160 : index
    %20 = vector.load %arg1[%c0_19, %c160] : memref<8x256xf32, #tpu.memory_space<vmem>>, vector<8x16xf32>
    %cst_20 = arith.constant 0.000000e+00 : f32
    %21 = vector.broadcast %cst_20 : f32 to vector<8x1xf32>
    %c0_21 = arith.constant 0 : index
    %c176 = arith.constant 176 : index
    %22 = vector.load %arg1[%c0_21, %c176] : memref<8x256xf32, #tpu.memory_space<vmem>>, vector<8x16xf32>
    %cst_22 = arith.constant 0.000000e+00 : f32
    %23 = vector.broadcast %cst_22 : f32 to vector<8x1xf32>
    %c0_23 = arith.constant 0 : index
    %c192 = arith.constant 192 : index
    %24 = vector.load %arg1[%c0_23, %c192] : memref<8x256xf32, #tpu.memory_space<vmem>>, vector<8x16xf32>
    %cst_24 = arith.constant 0.000000e+00 : f32
    %25 = vector.broadcast %cst_24 : f32 to vector<8x1xf32>
    %c0_25 = arith.constant 0 : index
    %c208 = arith.constant 208 : index
    %26 = vector.load %arg1[%c0_25, %c208] : memref<8x256xf32, #tpu.memory_space<vmem>>, vector<8x16xf32>
    %cst_26 = arith.constant 0.000000e+00 : f32
    %27 = vector.broadcast %cst_26 : f32 to vector<8x1xf32>
    %c0_27 = arith.constant 0 : index
    %c224 = arith.constant 224 : index
    %28 = vector.load %arg1[%c0_27, %c224] : memref<8x256xf32, #tpu.memory_space<vmem>>, vector<8x16xf32>
    %cst_28 = arith.constant 0.000000e+00 : f32
    %29 = vector.broadcast %cst_28 : f32 to vector<8x1xf32>
    %c0_29 = arith.constant 0 : index
    %c240 = arith.constant 240 : index
    %30 = vector.load %arg1[%c0_29, %c240] : memref<8x256xf32, #tpu.memory_space<vmem>>, vector<8x16xf32>
    %cst_30 = arith.constant 0.000000e+00 : f32
    %31 = vector.broadcast %cst_30 : f32 to vector<8x18xf32>
    %32 = tpu.concatenate %0, %1, %2, %3, %4, %5, %6, %7, %8, %9, %10, %11, %12, %13, %14, %15 in 1 : vector<8x16xf32>, vector<8x1xf32>, vector<8x16xf32>, vector<8x1xf32>, vector<8x16xf32>, vector<8x1xf32>, vector<8x16xf32>, vector<8x1xf32>, vector<8x16xf32>, vector<8x1xf32>, vector<8x16xf32>, vector<8x1xf32>, vector<8x16xf32>, vector<8x1xf32>, vector<8x16xf32>, vector<8x1xf32> -> vector<8x136xf32>
    %33 = tpu.concatenate %16, %17, %18, %19, %20, %21, %22, %23, %24, %25, %26, %27, %28, %29, %30, %31 in 1 : vector<8x16xf32>, vector<8x1xf32>, vector<8x16xf32>, vector<8x1xf32>, vector<8x16xf32>, vector<8x1xf32>, vector<8x16xf32>, vector<8x1xf32>, vector<8x16xf32>, vector<8x1xf32>, vector<8x16xf32>, vector<8x1xf32>, vector<8x16xf32>, vector<8x1xf32>, vector<8x16xf32>, vector<8x18xf32> -> vector<8x153xf32>
    %34 = tpu.concatenate %32, %33 in 1 : vector<8x136xf32>, vector<8x153xf32> -> vector<8x289xf32>
    %c0_31 = arith.constant 0 : index
    %c0_32 = arith.constant 0 : index
    %35 = vector.load %arg2[%c0_31, %c0_32] : memref<8x289xf32, #tpu.memory_space<vmem>>, vector<8x289xf32>
    tpu.vector_store %arg2[%c0_31, %c0_32], %34 {strides = array<i32>} : memref<8x289xf32, #tpu.memory_space<vmem>>, vector<8x289xf32>,
    return
  }
  func.func @transform_0(%arg0: i32) -> (i32, i32) {
    %c0_i32 = arith.constant 0 : i32
    %c0_i32_0 = arith.constant 0 : i32
    return %arg0, %c0_i32 : i32, i32
  }
  func.func @transform_1(%arg0: i32) -> (i32, i32) {
    %c0_i32 = arith.constant 0 : i32
    %c0_i32_0 = arith.constant 0 : i32
    return %arg0, %c0_i32 : i32, i32
  }
}

</mosaic_0001>

<llo_original>
// kernel: tpu_custom_call.1
$region0: #{tpu_custom_call.1}
  #allocation0 [shape = 'u32[]', space=smem, size = 0x4, offset = 0x4, fixed_abs, tag = 'smem constant byte address 0x4 - core index']
  #allocation1 [shape = 'u32[144,128]{1,0:T(1,128)}', space=vmem, size = 0x12000, scoped, tag = 'internal scratch']
  %s0 = inlined_call_operand.hbm [shape: f32[8,256], index: 0, kind: input, shape index: {}]
  %s1 = inlined_call_operand.hbm [shape: f32[8,289], index: 1, kind: output, shape index: {}]
  %s2 = sld [smem:[#allocation0]]
  $region18: #{tpu_custom_call.1} parent=0
    _
  %s4 = ssub.s32 1, %s2
  %s5 = scalar_select 0, %s4, %s2
  $region1: #{tpu_custom_call.1} parent=0
    #allocation2 [shape = 'u8[8192]{0}', space=vmem, size = 0x2000, scoped, tag = 'input window, operand 0, single buffered']
    #allocation3 [shape = 's32[1]{0}', space=sflag, size = 0x4, scoped, tag = 'scoped memory for tpu_custom_call.1']
    #allocation4 [shape = 's32[1]{0}', space=sflag, size = 0x4, scoped, tag = 'scoped memory for tpu_custom_call.1']
    #allocation5 [shape = 'u8[12288]{0}', space=vmem, size = 0x3000, scoped, tag = 'output window, operand 0, single buffered']
    %6 = vsyncpa [#allocation3], 0
    %7 = vsyncpa [#allocation4], 0
    // Predicated region
    $region2: #{tpu_custom_call.1} parent=1 // pred_check
      _
    $region3: #{tpu_custom_call.1} parent=1 // pred_check_branch
      %9 = sbr.rel (0) target = $region5
    $region4: #{tpu_custom_call.1} parent=1 // pred_region
      %s11 = ssub.s32 256, 256
      %12 = vsyncadd [#allocation3], %s11
      %s14 = sshll.u32 [#allocation2], 4
      %s15 = int_to_ptr.vmem [resolvable:$true] %s14
      %17 = dma.hbm_to_vmem [thread:$0]  %s0, 256, %s15, [#allocation3]
    $region5: #{tpu_custom_call.1} parent=1 // pred_fallthru
      _
    // Predicated region
    $region6: #{tpu_custom_call.1} parent=1 // pred_check
      _
    $region7: #{tpu_custom_call.1} parent=1 // pred_check_branch
      %19 = sbr.rel (0) target = $region9
    $region8: #{tpu_custom_call.1} parent=1 // pred_region
      %20 = dma.done [#allocation3], 256
    $region9: #{tpu_custom_call.1} parent=1 // pred_fallthru
      _
    %v21 = vld [vmem:[#allocation2] sm:$0xff]
    %v22 = vld [vmem:[#allocation2 + $0x8] sm:$0xff]
    %24 = vrot.lane.b32.xlu0 %v21, 1
    %v25 = vpop.permute.xlu0 %24
    %27 = vrot.lane.b32.xlu0 %v21, 2
    %v28 = vpop.permute.xlu0 %27
    %30 = vrot.lane.b32.xlu0 %v21, 3
    %v31 = vpop.permute.xlu0 %30
    %33 = vrot.lane.b32.xlu0 %v21, 4
    %v34 = vpop.permute.xlu0 %33
    %36 = vrot.lane.b32.xlu0 %v21, 5
    %v37 = vpop.permute.xlu0 %36
    %39 = vrot.lane.b32.xlu0 %v21, 6
    %v40 = vpop.permute.xlu0 %39
    %42 = vrot.lane.b32.xlu0 %v21, 7
    %v43 = vpop.permute.xlu0 %42
    %vm45 = vcmask 130048
    %v46 = vsel %vm45, %v21, 0.0
    %vm47 = vcmask 138240
    %v48 = vsel %vm47, %v46, %v25
    %vm49 = vcmask 269312
    %v50 = vsel %vm49, %v48, 0.0
    %vm51 = vcmask 277504
    %v52 = vsel %vm51, %v50, %v28
    %vm53 = vcmask 408576
    %v54 = vsel %vm53, %v52, 0.0
    %vm55 = vcmask 416768
    %v56 = vsel %vm55, %v54, %v31
    %vm57 = vcmask 547840
    %v58 = vsel %vm57, %v56, 0.0
    %vm59 = vcmask 556032
    %v60 = vsel %vm59, %v58, %v34
    %vm61 = vcmask 687104
    %v62 = vsel %vm61, %v60, 0.0
    %vm63 = vcmask 695296
    %v64 = vsel %vm63, %v62, %v37
    %vm65 = vcmask 826368
    %v66 = vsel %vm65, %v64, 0.0
    %vm67 = vcmask 834560
    %v68 = vsel %vm67, %v66, %v40
    %vm69 = vcmask 965632
    %v70 = vsel %vm69, %v68, 0.0
    %vm71 = vcmask 973824
    %v72 = vsel %vm71, %v70, %v43
    %vm73 = vcmask 56320
    %v74 = vsel %vm73, %v43, 0.0
    %76 = vrot.lane.b32.xlu0 %v22, 1
    %v77 = vpop.permute.xlu0 %76
    %79 = vrot.lane.b32.xlu0 %v22, 2
    %v80 = vpop.permute.xlu0 %79
    %82 = vrot.lane.b32.xlu0 %v22, 3
    %v83 = vpop.permute.xlu0 %82
    %85 = vrot.lane.b32.xlu0 %v22, 4
    %v86 = vpop.permute.xlu0 %85
    %88 = vrot.lane.b32.xlu0 %v22, 5
    %v89 = vpop.permute.xlu0 %88
    %91 = vrot.lane.b32.xlu0 %v22, 6
    %v92 = vpop.permute.xlu0 %91
    %94 = vrot.lane.b32.xlu0 %v22, 7
    %v95 = vpop.permute.xlu0 %94
    %v97 = vsel %vm45, %v22, 0.0
    %v98 = vsel %vm47, %v97, %v77
    %v99 = vsel %vm49, %v98, 0.0
    %v100 = vsel %vm51, %v99, %v80
    %v101 = vsel %vm53, %v100, 0.0
    %v102 = vsel %vm55, %v101, %v83
    %v103 = vsel %vm57, %v102, 0.0
    %v104 = vsel %vm59, %v103, %v86
    %v105 = vsel %vm61, %v104, 0.0
    %v106 = vsel %vm63, %v105, %v89
    %v107 = vsel %vm65, %v106, 0.0
    %v108 = vsel %vm67, %v107, %v92
    %v109 = vsel %vm69, %v108, 0.0
    %v110 = vsel %vm71, %v109, %v95
    %v111 = vsel %vm73, %v95, 0.0
    %114 = vrot.lane.b32.xlu0 %v110, 8
    %v115 = vpop.permute.xlu0 %114
    %116 = vrot.lane.b32.xlu0 %v111, 8
    %v117 = vpop.permute.xlu0 %116
    %vm118 = vcmask 64512
    %v119 = vsel %vm118, %v115, %v117
    %v122 = vsel %vm118, %v74, %v115
    %123 = vst [vmem:[#allocation5] sm:$0xff] %v72
    %124 = vst [vmem:[#allocation5 + $0x8] sm:$0xff] %v122
    %125 = vst.msk [vmem:[#allocation5 + $0x10] sm:$0xff] %vm49, %v119
    // Predicated region
    $region10: #{tpu_custom_call.1} parent=1 // pred_check
      _
    $region11: #{tpu_custom_call.1} parent=1 // pred_check_branch
      %127 = sbr.rel (0) target = $region13
    $region12: #{tpu_custom_call.1} parent=1 // pred_region
      %s129 = ssub.s32 384, 384
      %130 = vsyncadd [#allocation4], %s129
      %s132 = sshll.u32 [#allocation5], 4
      %s133 = int_to_ptr.vmem [resolvable:$true] %s132
      %135 = dma.vmem_to_hbm [thread:$0]  %s133, 384, %s1, [#allocation4]
    $region13: #{tpu_custom_call.1} parent=1 // pred_fallthru
      _
    // Predicated region
    $region14: #{tpu_custom_call.1} parent=1 // pred_check
      _
    $region15: #{tpu_custom_call.1} parent=1 // pred_check_branch
      %137 = sbr.rel (0) target = $region17
    $region16: #{tpu_custom_call.1} parent=1 // pred_region
      %138 = dma.done [#allocation4], 384
    $region17: #{tpu_custom_call.1} parent=1 // pred_fallthru
      _
    %139 = vsyncpa [#allocation3], 1
    %140 = vsyncpa [#allocation4], 1

</llo_original>
